<compile_context>
chip_gen: v5e
topology: v5e:2x2
jax: 0.10.0
libtpu: 0.0.40
codegen_flags: <defaults>
</compile_context>

<pallas_src>
import jax
import jax.numpy as jnp
from jax.experimental import pallas as pl
from jax.experimental.pallas import tpu as pltpu

ALPHA = 0.8
GAMMA = 2

LANES = 128
TARGET_BLOCK_BYTES = 4 * 1024 * 1024      # per input, per pipeline buffer
VMEM_LIMIT_BYTES = 32 * 1024 * 1024       # explicit: > v5e's 16 MiB default


def _round_up(a, b):
    return (a + b - 1) // b * b


def _make_bce_sum_kernel(block_m, m_total, last, mask_needed):
    """Kernel accumulating sum of stable per-element BCE into an (8, last) acc."""

    def kernel(x_ref, t_ref, acc_ref):
        i = pl.program_id(0)

        @pl.when(i == 0)
        def _init():
            acc_ref[...] = jnp.zeros_like(acc_ref)

        # Cast in-register; HBM carries the native dtypes (VPU work hidden
        # under the DMA).
        x = x_ref[...].astype(jnp.float32)      # (block_m, last) logits
        t = t_ref[...].astype(jnp.float32)      # (block_m, last) targets in [0,1]

        # Numerically stable sigmoid + binary_cross_entropy:
        #   t*softplus(-x) + (1-t)*softplus(x) = softplus(x) - x*t
        bce = jax.nn.softplus(x) - x * t

        if mask_needed:
            # Ragged last block: rows beyond m_total hold undefined data.
            # Mask AFTER computing bce so any inf/nan there is simply dropped.
            row = i * block_m + jax.lax.broadcasted_iota(
                jnp.int32, (block_m, last), 0)
            bce = jnp.where(row < m_total, bce, 0.0)

        # VPU-only cross-vreg partial reduction; each (8, last) group is
        # vreg-aligned so the reshape is layout-free and the adds ride the
        # 4 VALU slots (no per-step XLU/scalar collapse).
        acc_ref[...] += jnp.sum(bce.reshape(block_m // 8, 8, last), axis=0)

    return kernel


def focal_loss(inputs, targets, alpha=ALPHA, gamma=GAMMA):
    """inputs: raw logits (any shape/dtype); targets: same shape, values in [0,1]."""
    assert inputs.shape == targets.shape
    n = inputs.size

    # Collapse leading dims only (layout-preserving, no relayout copy); the
    # trailing dim is kept as-is so no wrapper-side data movement happens.
    if inputs.ndim == 1:
        last = LANES if (n % LANES == 0 and n >= LANES) else n
    else:
        last = inputs.shape[-1]
    m = n // last
    x2 = inputs.reshape(m, last)
    t2 = targets.reshape(m, last)

    # Block sizing: ~TARGET_BLOCK_BYTES per input per buffer, rows a multiple
    # of 32 (covers bf16/int8 sublane packing), never more than needed.
    # TODO(synk): tile the trailing dim too for extremely wide last dims.
    lanes_padded = _round_up(last, LANES)
    itemsize = max(jnp.dtype(inputs.dtype).itemsize,
                   jnp.dtype(targets.dtype).itemsize, 1)
    rows_target = max(32, (TARGET_BLOCK_BYTES // (lanes_padded * itemsize)) // 32 * 32)
    block_m = min(rows_target, _round_up(m, 32))
    num_chunks = pl.cdiv(m, block_m)
    mask_needed = (m % block_m) != 0

    in_spec = pl.BlockSpec((block_m, last), lambda i: (i, 0))
    partial_sums = pl.pallas_call(
        _make_bce_sum_kernel(block_m, m, last, mask_needed),
        out_shape=jax.ShapeDtypeStruct((8, last), jnp.float32),
        grid_spec=pltpu.PrefetchScalarGridSpec(
            num_scalar_prefetch=0,
            grid=(num_chunks,),
            in_specs=[in_spec, in_spec],
            out_specs=pl.BlockSpec((8, last), lambda i: (0, 0)),
        ),
        compiler_params=pltpu.CompilerParams(
            dimension_semantics=("arbitrary",),
            vmem_limit_bytes=VMEM_LIMIT_BYTES),
    )(x2, t2)

    # Tiny epilogue: collapse partials, reduction='mean', focal transform.
    mean_bce = jnp.sum(partial_sums) / n
    bce_exp = jnp.exp(-mean_bce)
    return alpha * (1.0 - bce_exp) ** gamma * mean_bce


def _reference(inputs, targets, alpha=ALPHA, gamma=GAMMA):
    p = jax.nn.sigmoid(inputs.reshape(-1).astype(jnp.float32))
    t = targets.reshape(-1).astype(jnp.float32)
    bce = -jnp.mean(t * jnp.log(p) + (1.0 - t) * jnp.log(1.0 - p))
    return alpha * (1.0 - jnp.exp(-bce)) ** gamma * bce


if __name__ == "__main__":
    key = jax.random.PRNGKey(0)
    k1, k2 = jax.random.split(key)
    # NCHW logits, binary targets — small synthetic shapes.
    inputs = jax.random.normal(k1, (2, 4, 16, 16), dtype=jnp.float32)
    targets = (jax.random.uniform(k2, (2, 4, 16, 16)) > 0.5).astype(jnp.float32)

    loss = focal_loss(inputs, targets)
    jax.block_until_ready(loss)

    ref = _reference(inputs, targets)
    assert jnp.allclose(loss, ref, rtol=1e-5, atol=1e-6), (loss, ref)
    print("KERNEL_OK")
</pallas_src>

<mosaic_0001>
module attributes {stable_mosaic.version = 11 : i64} {
  func.func @kernel(%arg0: i32, %arg1: memref<128x16xf32, #tpu.memory_space<vmem>>, %arg2: memref<128x16xf32, #tpu.memory_space<vmem>>, %arg3: memref<8x16xf32, #tpu.memory_space<vmem>>) attributes {dimension_semantics = [#tpu.dimension_semantics<arbitrary>], iteration_bounds = array<i64: 1>, scalar_prefetch = 0 : i64, scratch_operands = 0 : i64, tpu.core_type = #tpu.core_type<tc>, window_params = [{transform_indices = @transform_0, window_bounds = array<i64: 128, 16>}, {transform_indices = @transform_1, window_bounds = array<i64: 128, 16>}, {pipeline_mode = #tpu.pipeline_mode<synchronous>, transform_indices = @transform_2, window_bounds = array<i64: 8, 16>}]} {
    %c0_i32 = arith.constant 0 : i32
    %0 = arith.cmpi eq, %arg0, %c0_i32 : i32
    %1 = arith.extui %0 : i1 to i32
    %c0_i32_0 = arith.constant 0 : i32
    %2 = arith.cmpi ne, %1, %c0_i32_0 : i32
    scf.if %2 {
      %cst_10 = arith.constant 0.000000e+00 : f32
      %26 = vector.broadcast %cst_10 : f32 to vector<8x16xf32>
      %c0_11 = arith.constant 0 : index
      %c0_12 = arith.constant 0 : index
      %27 = vector.load %arg3[%c0_11, %c0_12] : memref<8x16xf32, #tpu.memory_space<vmem>>, vector<8x16xf32>
      tpu.vector_store %arg3[%c0_11, %c0_12], %26 {strides = array<i32>} : memref<8x16xf32, #tpu.memory_space<vmem>>, vector<8x16xf32>,
    } else {
    }
    %c0 = arith.constant 0 : index
    %c0_1 = arith.constant 0 : index
    %3 = vector.load %arg1[%c0, %c0_1] : memref<128x16xf32, #tpu.memory_space<vmem>>, vector<128x16xf32>
    %c0_2 = arith.constant 0 : index
    %c0_3 = arith.constant 0 : index
    %4 = vector.load %arg2[%c0_2, %c0_3] : memref<128x16xf32, #tpu.memory_space<vmem>>, vector<128x16xf32>
    %cst = arith.constant 0.000000e+00 : f32
    %5 = vector.broadcast %cst : f32 to vector<128x16xf32>
    %6 = arith.maximumf %3, %5 : vector<128x16xf32>
    %7 = vector.broadcast %cst : f32 to vector<128x16xf32>
    %8 = arith.subf %3, %7 : vector<128x16xf32>
    %9 = arith.cmpf one, %8, %8 : vector<128x16xf32>
    %10 = vector.broadcast %cst : f32 to vector<128x16xf32>
    %11 = arith.addf %3, %10 : vector<128x16xf32>
    %12 = math.absf %8 : vector<128x16xf32>
    %cst_4 = arith.constant 0.000000e+00 : f32
    %13 = vector.broadcast %cst_4 : f32 to vector<128x16xf32>
    %14 = arith.subf %13, %12 : vector<128x16xf32>
    %15 = math.exp %14 : vector<128x16xf32>
    %16 = math.log1p %15 : vector<128x16xf32>
    %17 = arith.addf %6, %16 : vector<128x16xf32>
    %18 = arith.select %9, %11, %17 : vector<128x16xi1>, vector<128x16xf32>
    %19 = arith.mulf %3, %4 : vector<128x16xf32>
    %20 = arith.subf %18, %19 : vector<128x16xf32>
    %c0_5 = arith.constant 0 : index
    %c0_6 = arith.constant 0 : index
    %21 = vector.load %arg3[%c0_5, %c0_6] : memref<8x16xf32, #tpu.memory_space<vmem>>, vector<8x16xf32>
    %22 = vector.shape_cast %20 : vector<128x16xf32> to vector<16x8x16xf32>
    %cst_7 = arith.constant dense<0.000000e+00> : vector<8x16xf32>
    %23 = vector.multi_reduction <add>, %22, %cst_7 [0] : vector<16x8x16xf32> to vector<8x16xf32>
    %24 = arith.addf %21, %23 : vector<8x16xf32>
    %c0_8 = arith.constant 0 : index
    %c0_9 = arith.constant 0 : index
    %25 = vector.load %arg3[%c0_8, %c0_9] : memref<8x16xf32, #tpu.memory_space<vmem>>, vector<8x16xf32>
    tpu.vector_store %arg3[%c0_8, %c0_9], %24 {strides = array<i32>} : memref<8x16xf32, #tpu.memory_space<vmem>>, vector<8x16xf32>,
    return
  }
  func.func @transform_0(%arg0: i32) -> (i32, i32) {
    %c0_i32 = arith.constant 0 : i32
    %c0_i32_0 = arith.constant 0 : i32
    return %arg0, %c0_i32 : i32, i32
  }
  func.func @transform_1(%arg0: i32) -> (i32, i32) {
    %c0_i32 = arith.constant 0 : i32
    %c0_i32_0 = arith.constant 0 : i32
    return %arg0, %c0_i32 : i32, i32
  }
  func.func @transform_2(%arg0: i32) -> (i32, i32) {
    %c0_i32 = arith.constant 0 : i32
    %c0_i32_0 = arith.constant 0 : i32
    %c0_i32_1 = arith.constant 0 : i32
    return %c0_i32, %c0_i32_0 : i32, i32
  }
}

</mosaic_0001>

<llo_original>
// kernel: tpu_custom_call.1
$region0: #{tpu_custom_call.1}
  #allocation0 [shape = 'u32[]', space=smem, size = 0x4, offset = 0x4, fixed_abs, tag = 'smem constant byte address 0x4 - core index']
  #allocation1 [shape = 'u32[72,128]{1,0:T(1,128)}', space=vmem, size = 0x9000, scoped, tag = 'internal scratch']
  %s0 = inlined_call_operand.vmem [shape: f32[128,16], index: 0, kind: input, shape index: {}]
  %s1 = inlined_call_operand.vmem [shape: f32[128,16], index: 1, kind: input, shape index: {}]
  %s2 = inlined_call_operand.hbm [shape: f32[8,16], index: 2, kind: output, shape index: {}]
  %s3 = sld [smem:[#allocation0]]
  $region22: #{tpu_custom_call.1} parent=0
    _
  %s5 = ssub.s32 1, %s3
  %s6 = scalar_select 0, %s5, %s3
  $region1: #{tpu_custom_call.1} parent=0
    #allocation2 [shape = 'u8[4096]{0}', space=vmem, size = 0x1000, scoped, tag = 'output window, operand 0, single buffered']
    #allocation3 [shape = 's32[1]{0}', space=sflag, size = 0x4, scoped, tag = 'scoped memory for tpu_custom_call.1']
    %7 = vsyncpa [#allocation3], 0
    // Predicated region
    $region2: #{tpu_custom_call.1} parent=1 // pred_check
      _
    $region3: #{tpu_custom_call.1} parent=1 // pred_check_branch
      %9 = sbr.rel (0) target = $region5
    $region4: #{tpu_custom_call.1} parent=1 // pred_region
      _
    $region5: #{tpu_custom_call.1} parent=1 // pred_fallthru
      _
    // Predicated region
    $region6: #{tpu_custom_call.1} parent=1 // pred_check
      _
    $region7: #{tpu_custom_call.1} parent=1 // pred_check_branch
      %11 = sbr.rel (0) target = $region9
    $region8: #{tpu_custom_call.1} parent=1 // pred_region
      _
    $region9: #{tpu_custom_call.1} parent=1 // pred_fallthru
      _
    %p12 = scmp.eq.s32.totalorder 0, 0
    // Predicated region
    $region10: #{tpu_custom_call.1} parent=1 // pred_check
      %p13 = pneg %p12
    $region11: #{tpu_custom_call.1} parent=1 // pred_check_branch
      %15 = sbr.rel (%p13) target = $region13
    $region12: #{tpu_custom_call.1} parent=1 // pred_region
      %vm16 = vcmask 130048
      %17 = vst.msk [vmem:[#allocation2] sm:$0xff] %vm16, 0.0
    $region13: #{tpu_custom_call.1} parent=1 // pred_fallthru
      _
    %v18 = vld [vmem:[%s0] sm:$0xff]
    %v19 = vld [vmem:[%s0 + $0x8] sm:$0xff]
    %v20 = vld [vmem:[%s0 + $0x10] sm:$0xff]
    %v21 = vld [vmem:[%s0 + $0x18] sm:$0xff]
    %v22 = vld [vmem:[%s0 + $0x20] sm:$0xff]
    %v23 = vld [vmem:[%s0 + $0x28] sm:$0xff]
    %v24 = vld [vmem:[%s0 + $0x30] sm:$0xff]
    %v25 = vld [vmem:[%s0 + $0x38] sm:$0xff]
    %v26 = vld [vmem:[%s0 + $0x40] sm:$0xff]
    %v27 = vld [vmem:[%s0 + $0x48] sm:$0xff]
    %v28 = vld [vmem:[%s0 + $0x50] sm:$0xff]
    %v29 = vld [vmem:[%s0 + $0x58] sm:$0xff]
    %v30 = vld [vmem:[%s0 + $0x60] sm:$0xff]
    %v31 = vld [vmem:[%s0 + $0x68] sm:$0xff]
    %v32 = vld [vmem:[%s0 + $0x70] sm:$0xff]
    %v33 = vld [vmem:[%s0 + $0x78] sm:$0xff]
    %v34 = vld [vmem:[%s1] sm:$0xff]
    %v35 = vld [vmem:[%s1 + $0x8] sm:$0xff]
    %v36 = vld [vmem:[%s1 + $0x10] sm:$0xff]
    %v37 = vld [vmem:[%s1 + $0x18] sm:$0xff]
    %v38 = vld [vmem:[%s1 + $0x20] sm:$0xff]
    %v39 = vld [vmem:[%s1 + $0x28] sm:$0xff]
    %v40 = vld [vmem:[%s1 + $0x30] sm:$0xff]
    %v41 = vld [vmem:[%s1 + $0x38] sm:$0xff]
    %v42 = vld [vmem:[%s1 + $0x40] sm:$0xff]
    %v43 = vld [vmem:[%s1 + $0x48] sm:$0xff]
    %v44 = vld [vmem:[%s1 + $0x50] sm:$0xff]
    %v45 = vld [vmem:[%s1 + $0x58] sm:$0xff]
    %v46 = vld [vmem:[%s1 + $0x60] sm:$0xff]
    %v47 = vld [vmem:[%s1 + $0x68] sm:$0xff]
    %v48 = vld [vmem:[%s1 + $0x70] sm:$0xff]
    %v49 = vld [vmem:[%s1 + $0x78] sm:$0xff]
    %v50 = vmax.f32 %v18, 0.0
    %v51 = vmax.f32 %v19, 0.0
    %v52 = vmax.f32 %v20, 0.0
    %v53 = vmax.f32 %v21, 0.0
    %v54 = vmax.f32 %v22, 0.0
    %v55 = vmax.f32 %v23, 0.0
    %v56 = vmax.f32 %v24, 0.0
    %v57 = vmax.f32 %v25, 0.0
    %v58 = vmax.f32 %v26, 0.0
    %v59 = vmax.f32 %v27, 0.0
    %v60 = vmax.f32 %v28, 0.0
    %v61 = vmax.f32 %v29, 0.0
    %v62 = vmax.f32 %v30, 0.0
    %v63 = vmax.f32 %v31, 0.0
    %v64 = vmax.f32 %v32, 0.0
    %v65 = vmax.f32 %v33, 0.0
    %vm66 = vcmp.ne.f32.partialorder %v18, %v18
    %vm67 = vcmp.ne.f32.partialorder %v19, %v19
    %vm68 = vcmp.ne.f32.partialorder %v20, %v20
    %vm69 = vcmp.ne.f32.partialorder %v21, %v21
    %vm70 = vcmp.ne.f32.partialorder %v22, %v22
    %vm71 = vcmp.ne.f32.partialorder %v23, %v23
    %vm72 = vcmp.ne.f32.partialorder %v24, %v24
    %vm73 = vcmp.ne.f32.partialorder %v25, %v25
    %vm74 = vcmp.ne.f32.partialorder %v26, %v26
    %vm75 = vcmp.ne.f32.partialorder %v27, %v27
    %vm76 = vcmp.ne.f32.partialorder %v28, %v28
    %vm77 = vcmp.ne.f32.partialorder %v29, %v29
    %vm78 = vcmp.ne.f32.partialorder %v30, %v30
    %vm79 = vcmp.ne.f32.partialorder %v31, %v31
    %vm80 = vcmp.ne.f32.partialorder %v32, %v32
    %vm81 = vcmp.ne.f32.partialorder %v33, %v33
    %v82 = vadd.f32 %v18, 0.0
    %v83 = vadd.f32 %v19, 0.0
    %v84 = vadd.f32 %v20, 0.0
    %v85 = vadd.f32 %v21, 0.0
    %v86 = vadd.f32 %v22, 0.0
    %v87 = vadd.f32 %v23, 0.0
    %v88 = vadd.f32 %v24, 0.0
    %v89 = vadd.f32 %v25, 0.0
    %v90 = vadd.f32 %v26, 0.0
    %v91 = vadd.f32 %v27, 0.0
    %v92 = vadd.f32 %v28, 0.0
    %v93 = vadd.f32 %v29, 0.0
    %v94 = vadd.f32 %v30, 0.0
    %v95 = vadd.f32 %v31, 0.0
    %v96 = vadd.f32 %v32, 0.0
    %v97 = vadd.f32 %v33, 0.0
    %v98 = vand.u32 2147483647, %v18
    %v99 = vand.u32 2147483647, %v19
    %v100 = vand.u32 2147483647, %v20
    %v101 = vand.u32 2147483647, %v21
    %v102 = vand.u32 2147483647, %v22
    %v103 = vand.u32 2147483647, %v23
    %v104 = vand.u32 2147483647, %v24
    %v105 = vand.u32 2147483647, %v25
    %v106 = vand.u32 2147483647, %v26
    %v107 = vand.u32 2147483647, %v27
    %v108 = vand.u32 2147483647, %v28
    %v109 = vand.u32 2147483647, %v29
    %v110 = vand.u32 2147483647, %v30
    %v111 = vand.u32 2147483647, %v31
    %v112 = vand.u32 2147483647, %v32
    %v113 = vand.u32 2147483647, %v33
    %v114 = vsub.f32 0.0, %v98
    %v115 = vsub.f32 0.0, %v99
    %v116 = vsub.f32 0.0, %v100
    %v117 = vsub.f32 0.0, %v101
    %v118 = vsub.f32 0.0, %v102
    %v119 = vsub.f32 0.0, %v103
    %v120 = vsub.f32 0.0, %v104
    %v121 = vsub.f32 0.0, %v105
    %v122 = vsub.f32 0.0, %v106
    %v123 = vsub.f32 0.0, %v107
    %v124 = vsub.f32 0.0, %v108
    %v125 = vsub.f32 0.0, %v109
    %v126 = vsub.f32 0.0, %v110
    %v127 = vsub.f32 0.0, %v111
    %v128 = vsub.f32 0.0, %v112
    %v129 = vsub.f32 0.0, %v113
    %v130 = vmul.f32 %v114, 1.442695
    %v131 = vpow.pop %v130
    %v132 = vmul.f32 %v115, 1.442695
    %v133 = vpow.pop %v132
    %v134 = vmul.f32 %v116, 1.442695
    %v135 = vpow.pop %v134
    %v136 = vmul.f32 %v117, 1.442695
    %v137 = vpow.pop %v136
    %v138 = vmul.f32 %v118, 1.442695
    %v139 = vpow.pop %v138
    %v140 = vmul.f32 %v119, 1.442695
    %v141 = vpow.pop %v140
    %v142 = vmul.f32 %v120, 1.442695
    %v143 = vpow.pop %v142
    %v144 = vmul.f32 %v121, 1.442695
    %v145 = vpow.pop %v144
    %v146 = vmul.f32 %v122, 1.442695
    %v147 = vpow.pop %v146
    %v148 = vmul.f32 %v123, 1.442695
    %v149 = vpow.pop %v148
    %v150 = vmul.f32 %v124, 1.442695
    %v151 = vpow.pop %v150
    %v152 = vmul.f32 %v125, 1.442695
    %v153 = vpow.pop %v152
    %v154 = vmul.f32 %v126, 1.442695
    %v155 = vpow.pop %v154
    %v156 = vmul.f32 %v127, 1.442695
    %v157 = vpow.pop %v156
    %v158 = vmul.f32 %v128, 1.442695
    %v159 = vpow.pop %v158
    %v160 = vmul.f32 %v129, 1.442695
    %v161 = vpow.pop %v160
    %v162 = vadd.f32 %v131, 1.0
    %v163 = vlog2.pop %v162
    %v164 = vmul.f32 %v163, 0.6931472
    %v165 = vmul.f32 -0.5, %v131
    %v166 = vadd.f32 %v165, 1.0
    %v167 = vmul.f32 %v166, %v131
    %v168 = vand.u32 2147483647, %v131
    %vm169 = vcmp.lt.f32.partialorder %v168, 0.0004427343
    %v170 = vsel %vm169, %v167, %v164
    %v171 = vadd.f32 %v133, 1.0
    %v172 = vlog2.pop %v171
    %v173 = vmul.f32 %v172, 0.6931472
    %v174 = vmul.f32 -0.5, %v133
    %v175 = vadd.f32 %v174, 1.0
    %v176 = vmul.f32 %v175, %v133
    %v177 = vand.u32 2147483647, %v133
    %vm178 = vcmp.lt.f32.partialorder %v177, 0.0004427343
    %v179 = vsel %vm178, %v176, %v173
    %v180 = vadd.f32 %v135, 1.0
    %v181 = vlog2.pop %v180
    %v182 = vmul.f32 %v181, 0.6931472
    %v183 = vmul.f32 -0.5, %v135
    %v184 = vadd.f32 %v183, 1.0
    %v185 = vmul.f32 %v184, %v135
    %v186 = vand.u32 2147483647, %v135
    %vm187 = vcmp.lt.f32.partialorder %v186, 0.0004427343
    %v188 = vsel %vm187, %v185, %v182
    %v189 = vadd.f32 %v137, 1.0
    %v190 = vlog2.pop %v189
    %v191 = vmul.f32 %v190, 0.6931472
    %v192 = vmul.f32 -0.5, %v137
    %v193 = vadd.f32 %v192, 1.0
    %v194 = vmul.f32 %v193, %v137
    %v195 = vand.u32 2147483647, %v137
    %vm196 = vcmp.lt.f32.partialorder %v195, 0.0004427343
    %v197 = vsel %vm196, %v194, %v191
    %v198 = vadd.f32 %v139, 1.0
    %v199 = vlog2.pop %v198
    %v200 = vmul.f32 %v199, 0.6931472
    %v201 = vmul.f32 -0.5, %v139
    %v202 = vadd.f32 %v201, 1.0
    %v203 = vmul.f32 %v202, %v139
    %v204 = vand.u32 2147483647, %v139
    %vm205 = vcmp.lt.f32.partialorder %v204, 0.0004427343
    %v206 = vsel %vm205, %v203, %v200
    %v207 = vadd.f32 %v141, 1.0
    %v208 = vlog2.pop %v207
    %v209 = vmul.f32 %v208, 0.6931472
    %v210 = vmul.f32 -0.5, %v141
    %v211 = vadd.f32 %v210, 1.0
    %v212 = vmul.f32 %v211, %v141
    %v213 = vand.u32 2147483647, %v141
    %vm214 = vcmp.lt.f32.partialorder %v213, 0.0004427343
    %v215 = vsel %vm214, %v212, %v209
    %v216 = vadd.f32 %v143, 1.0
    %v217 = vlog2.pop %v216
    %v218 = vmul.f32 %v217, 0.6931472
    %v219 = vmul.f32 -0.5, %v143
    %v220 = vadd.f32 %v219, 1.0
    %v221 = vmul.f32 %v220, %v143
    %v222 = vand.u32 2147483647, %v143
    %vm223 = vcmp.lt.f32.partialorder %v222, 0.0004427343
    %v224 = vsel %vm223, %v221, %v218
    %v225 = vadd.f32 %v145, 1.0
    %v226 = vlog2.pop %v225
    %v227 = vmul.f32 %v226, 0.6931472
    %v228 = vmul.f32 -0.5, %v145
    %v229 = vadd.f32 %v228, 1.0
    %v230 = vmul.f32 %v229, %v145
    %v231 = vand.u32 2147483647, %v145
    %vm232 = vcmp.lt.f32.partialorder %v231, 0.0004427343
    %v233 = vsel %vm232, %v230, %v227
    %v234 = vadd.f32 %v147, 1.0
    %v235 = vlog2.pop %v234
    %v236 = vmul.f32 %v235, 0.6931472
    %v237 = vmul.f32 -0.5, %v147
    %v238 = vadd.f32 %v237, 1.0
    %v239 = vmul.f32 %v238, %v147
    %v240 = vand.u32 2147483647, %v147
    %vm241 = vcmp.lt.f32.partialorder %v240, 0.0004427343
    %v242 = vsel %vm241, %v239, %v236
    %v243 = vadd.f32 %v149, 1.0
    %v244 = vlog2.pop %v243
    %v245 = vmul.f32 %v244, 0.6931472
    %v246 = vmul.f32 -0.5, %v149
    %v247 = vadd.f32 %v246, 1.0
    %v248 = vmul.f32 %v247, %v149
    %v249 = vand.u32 2147483647, %v149
    %vm250 = vcmp.lt.f32.partialorder %v249, 0.0004427343
    %v251 = vsel %vm250, %v248, %v245
    %v252 = vadd.f32 %v151, 1.0
    %v253 = vlog2.pop %v252
    %v254 = vmul.f32 %v253, 0.6931472
    %v255 = vmul.f32 -0.5, %v151
    %v256 = vadd.f32 %v255, 1.0
    %v257 = vmul.f32 %v256, %v151
    %v258 = vand.u32 2147483647, %v151
    %vm259 = vcmp.lt.f32.partialorder %v258, 0.0004427343
    %v260 = vsel %vm259, %v257, %v254
    %v261 = vadd.f32 %v153, 1.0
    %v262 = vlog2.pop %v261
    %v263 = vmul.f32 %v262, 0.6931472
    %v264 = vmul.f32 -0.5, %v153
    %v265 = vadd.f32 %v264, 1.0
    %v266 = vmul.f32 %v265, %v153
    %v267 = vand.u32 2147483647, %v153
    %vm268 = vcmp.lt.f32.partialorder %v267, 0.0004427343
    %v269 = vsel %vm268, %v266, %v263
    %v270 = vadd.f32 %v155, 1.0
    %v271 = vlog2.pop %v270
    %v272 = vmul.f32 %v271, 0.6931472
    %v273 = vmul.f32 -0.5, %v155
    %v274 = vadd.f32 %v273, 1.0
    %v275 = vmul.f32 %v274, %v155
    %v276 = vand.u32 2147483647, %v155
    %vm277 = vcmp.lt.f32.partialorder %v276, 0.0004427343
    %v278 = vsel %vm277, %v275, %v272
    %v279 = vadd.f32 %v157, 1.0
    %v280 = vlog2.pop %v279
    %v281 = vmul.f32 %v280, 0.6931472
    %v282 = vmul.f32 -0.5, %v157
    %v283 = vadd.f32 %v282, 1.0
    %v284 = vmul.f32 %v283, %v157
    %v285 = vand.u32 2147483647, %v157
    %vm286 = vcmp.lt.f32.partialorder %v285, 0.0004427343
    %v287 = vsel %vm286, %v284, %v281
    %v288 = vadd.f32 %v159, 1.0
    %v289 = vlog2.pop %v288
    %v290 = vmul.f32 %v289, 0.6931472
    %v291 = vmul.f32 -0.5, %v159
    %v292 = vadd.f32 %v291, 1.0
    %v293 = vmul.f32 %v292, %v159
    %v294 = vand.u32 2147483647, %v159
    %vm295 = vcmp.lt.f32.partialorder %v294, 0.0004427343
    %v296 = vsel %vm295, %v293, %v290
    %v297 = vadd.f32 %v161, 1.0
    %v298 = vlog2.pop %v297
    %v299 = vmul.f32 %v298, 0.6931472
    %v300 = vmul.f32 -0.5, %v161
    %v301 = vadd.f32 %v300, 1.0
    %v302 = vmul.f32 %v301, %v161
    %v303 = vand.u32 2147483647, %v161
    %vm304 = vcmp.lt.f32.partialorder %v303, 0.0004427343
    %v305 = vsel %vm304, %v302, %v299
    %v306 = vadd.f32 %v50, %v170
    %v307 = vadd.f32 %v51, %v179
    %v308 = vadd.f32 %v52, %v188
    %v309 = vadd.f32 %v53, %v197
    %v310 = vadd.f32 %v54, %v206
    %v311 = vadd.f32 %v55, %v215
    %v312 = vadd.f32 %v56, %v224
    %v313 = vadd.f32 %v57, %v233
    %v314 = vadd.f32 %v58, %v242
    %v315 = vadd.f32 %v59, %v251
    %v316 = vadd.f32 %v60, %v260
    %v317 = vadd.f32 %v61, %v269
    %v318 = vadd.f32 %v62, %v278
    %v319 = vadd.f32 %v63, %v287
    %v320 = vadd.f32 %v64, %v296
    %v321 = vadd.f32 %v65, %v305
    %v322 = vsel %vm66, %v82, %v306
    %v323 = vsel %vm67, %v83, %v307
    %v324 = vsel %vm68, %v84, %v308
    %v325 = vsel %vm69, %v85, %v309
    %v326 = vsel %vm70, %v86, %v310
    %v327 = vsel %vm71, %v87, %v311
    %v328 = vsel %vm72, %v88, %v312
    %v329 = vsel %vm73, %v89, %v313
    %v330 = vsel %vm74, %v90, %v314
    %v331 = vsel %vm75, %v91, %v315
    %v332 = vsel %vm76, %v92, %v316
    %v333 = vsel %vm77, %v93, %v317
    %v334 = vsel %vm78, %v94, %v318
    %v335 = vsel %vm79, %v95, %v319
    %v336 = vsel %vm80, %v96, %v320
    %v337 = vsel %vm81, %v97, %v321
    %v338 = vmul.f32 %v18, %v34
    %v339 = vmul.f32 %v19, %v35
    %v340 = vmul.f32 %v20, %v36
    %v341 = vmul.f32 %v21, %v37
    %v342 = vmul.f32 %v22, %v38
    %v343 = vmul.f32 %v23, %v39
    %v344 = vmul.f32 %v24, %v40
    %v345 = vmul.f32 %v25, %v41
    %v346 = vmul.f32 %v26, %v42
    %v347 = vmul.f32 %v27, %v43
    %v348 = vmul.f32 %v28, %v44
    %v349 = vmul.f32 %v29, %v45
    %v350 = vmul.f32 %v30, %v46
    %v351 = vmul.f32 %v31, %v47
    %v352 = vmul.f32 %v32, %v48
    %v353 = vmul.f32 %v33, %v49
    %v354 = vsub.f32 %v322, %v338
    %v355 = vsub.f32 %v323, %v339
    %v356 = vsub.f32 %v324, %v340
    %v357 = vsub.f32 %v325, %v341
    %v358 = vsub.f32 %v326, %v342
    %v359 = vsub.f32 %v327, %v343
    %v360 = vsub.f32 %v328, %v344
    %v361 = vsub.f32 %v329, %v345
    %v362 = vsub.f32 %v330, %v346
    %v363 = vsub.f32 %v331, %v347
    %v364 = vsub.f32 %v332, %v348
    %v365 = vsub.f32 %v333, %v349
    %v366 = vsub.f32 %v334, %v350
    %v367 = vsub.f32 %v335, %v351
    %v368 = vsub.f32 %v336, %v352
    %v369 = vsub.f32 %v337, %v353
    %v370 = vld [vmem:[#allocation2] sm:$0xff]
    %vm371 = vcmask 130048
    %v372 = vsel %vm371, %v354, 0.0
    %v373 = vsel %vm371, %v355, 0.0
    %v374 = vadd.f32 %v372, %v373
    %v375 = vsel %vm371, %v356, 0.0
    %v376 = vadd.f32 %v374, %v375
    %v377 = vsel %vm371, %v357, 0.0
    %v378 = vadd.f32 %v376, %v377
    %v379 = vsel %vm371, %v358, 0.0
    %v380 = vadd.f32 %v378, %v379
    %v381 = vsel %vm371, %v359, 0.0
    %v382 = vadd.f32 %v380, %v381
    %v383 = vsel %vm371, %v360, 0.0
    %v384 = vadd.f32 %v382, %v383
    %v385 = vsel %vm371, %v361, 0.0
    %v386 = vadd.f32 %v384, %v385
    %v387 = vsel %vm371, %v362, 0.0
    %v388 = vadd.f32 %v386, %v387
    %v389 = vsel %vm371, %v363, 0.0
    %v390 = vadd.f32 %v388, %v389
    %v391 = vsel %vm371, %v364, 0.0
    %v392 = vadd.f32 %v390, %v391
    %v393 = vsel %vm371, %v365, 0.0
    %v394 = vadd.f32 %v392, %v393
    %v395 = vsel %vm371, %v366, 0.0
    %v396 = vadd.f32 %v394, %v395
    %v397 = vsel %vm371, %v367, 0.0
    %v398 = vadd.f32 %v396, %v397
    %v399 = vsel %vm371, %v368, 0.0
    %v400 = vadd.f32 %v398, %v399
    %v401 = vsel %vm371, %v369, 0.0
    %v402 = vadd.f32 %v400, %v401
    %v403 = vadd.f32 %v370, %v402
    %404 = vst.msk [vmem:[#allocation2] sm:$0xff] %vm371, %v403
    // Predicated region
    $region14: #{tpu_custom_call.1} parent=1 // pred_check
      _
    $region15: #{tpu_custom_call.1} parent=1 // pred_check_branch
      %406 = sbr.rel (0) target = $region17
    $region16: #{tpu_custom_call.1} parent=1 // pred_region
      %408 = vsyncadd [#allocation3], 0
      %s410 = sshll.u32 [#allocation2], 4
      %s411 = int_to_ptr.vmem [resolvable:$true] %s410
      %s412 = sshll.u32 %s2, 4
      %s413 = int_to_ptr.hbm [resolvable:$true] %s412
      %415 = dma.vmem_to_hbm [thread:$0]  %s411, 128, %s413, [#allocation3]
    $region17: #{tpu_custom_call.1} parent=1 // pred_fallthru
      _
    // Predicated region
    $region18: #{tpu_custom_call.1} parent=1 // pred_check
      _
    $region19: #{tpu_custom_call.1} parent=1 // pred_check_branch
      %417 = sbr.rel (0) target = $region21
    $region20: #{tpu_custom_call.1} parent=1 // pred_region
      %419 = dma.done [#allocation3], 128
    $region21: #{tpu_custom_call.1} parent=1 // pred_fallthru
      _
    %420 = vsyncpa [#allocation3], 1

</llo_original>
